<compile_context>
chip_gen: v7x
topology: tpu7x:2x2x1
jax: 0.10.0
libtpu: 0.0.40
codegen_flags: <defaults>
</compile_context>

<pallas_src>
import math

import jax
import jax.numpy as jnp
from jax.experimental import pallas as pl
from jax.experimental.pallas import tpu as pltpu


def _build_pe_table(d_model: int, max_len: int = 600) -> jnp.ndarray:
    """Deterministic sinusoidal positional-encoding buffer, shape (max_len, d_model)."""
    position = jnp.arange(max_len, dtype=jnp.float32)[:, None]            # (max_len, 1)
    div_term = jnp.exp(
        jnp.arange(0, d_model, 2, dtype=jnp.float32) * (-math.log(10000.0) / d_model)
    )                                                                      # (d_model//2,)
    pe = jnp.zeros((max_len, d_model), dtype=jnp.float32)
    pe = pe.at[:, 0::2].set(jnp.sin(position * div_term))
    pe = pe.at[:, 1::2].set(jnp.cos(position * div_term))
    return pe


# Below this total size, a standalone kernel launch costs more than the whole op.
_FAST_PATH_BYTES = 256 << 10


def _device_kind() -> str:
    try:
        return jax.devices()[0].device_kind.lower()
    except Exception:
        return ""


def _block_config():
    """Return (target_block_bytes, vmem_limit_bytes_or_None, is_v7x) per TPU generation."""
    kind = _device_kind()
    is_v5 = "v5" in kind
    is_v7 = ("v7" in kind) or ("7x" in kind)
    if is_v5:
        # v5e: 16 MiB scoped-VMEM default; 2 in + 2 out 2 MiB buffers stay well under it.
        return 2 << 20, None, False
    # v6e / v7x (and unknown-but-newer): larger blocks amortize per-step overhead against
    # faster HBM. Explicit vmem_limit covers 4 x 4 MiB pipeline buffers plus the PE row and
    # stays under v7x's 32 MiB scoped default (64 MiB physical) and every chip's physical VMEM.
    return 4 << 20, 28 << 20, is_v7


def _sublane_multiple(itemsize: int) -> int:
    # Rows per packed vreg tile: f32 -> 8, bf16 -> 16, int8/fp8 -> 32.
    return max(8, 32 // max(int(itemsize), 1))


def _choose_blocks(rows, cols, itemsize, target_bytes, want_two_steps):
    """Pick (row_block, col_block) for the flattened (rows, cols) slab."""
    sub = _sublane_multiple(itemsize)
    slab = rows * cols * itemsize
    if slab <= target_bytes:
        # Whole slab in one grid step, unless splitting lets v7x's 2 TCs both work.
        if want_two_steps and slab > (1 << 20) and rows >= 2 * sub and rows % (2 * sub) == 0:
            return rows // 2, cols
        return rows, cols
    per_strip = sub * cols * itemsize                      # one minimal row strip, full cols
    if per_strip <= target_bytes:
        rb = (target_bytes // (cols * itemsize)) // sub * sub
        return int(max(sub, min(rows, rb))), cols
    # Even a minimal sublane-multiple row strip of full cols exceeds the budget (huge S*D
    # fold): tile cols too, in multiples of 128 so stores stay lane-dense and unmasked.
    cb = (target_bytes // (sub * itemsize)) // 128 * 128
    cb = int(max(128, min(cols, cb)))
    rb = (target_bytes // (cb * itemsize)) // sub * sub
    rb = int(max(sub, min(rows, rb)))
    return rb, cb


def _pe_add_kernel(x_ref, pe_ref, o_ref):
    # x_ref: (row_block, col_block); pe_ref: (1, col_block) broadcast over rows. Pure VPU add.
    o_ref[...] = x_ref[...] + pe_ref[...]
    # TODO(synk): training-mode dropout (p=0.1) would use pltpu.prng_seed + stateful_bernoulli.


def positional_encoding_forward(x: jnp.ndarray, pe_table: jnp.ndarray,
                                *, force_kernel: bool = False) -> jnp.ndarray:
    """x: (B, S, D). Returns x + pe_table[S] broadcast over (B, S) -- the same math as the
    PyTorch module's `x + self.pe[:, x.shape[1], :]` in eval mode.

    NOTE: the input buffer is aliased to the output (in-place add); callers must not reuse
    x after this call (standard donation semantics).
    """
    B, S, D = x.shape
    max_len = pe_table.shape[0]
    if S >= max_len:
        # PyTorch would raise an IndexError here; JAX indexing would silently clamp.
        raise ValueError(f"sequence length {S} out of range for max_len={max_len}")

    # Match PyTorch type promotion (e.g. bf16 x + f32 pe buffer -> f32 output).
    out_dtype = jnp.promote_types(x.dtype, pe_table.dtype)
    pe_row = pe_table[S].astype(out_dtype)                 # (D,)
    xc = x.astype(out_dtype)
    itemsize = jnp.dtype(out_dtype).itemsize

    slab_bytes = B * S * D * itemsize
    if slab_bytes < _FAST_PATH_BYTES and not force_kernel:
        # Tiny slab (the module's shipped 2x8x32 case is 2 KiB): let XLA fuse the broadcast
        # add into neighboring ops -- strictly faster than any standalone kernel.
        return xc + pe_row[None, None, :]

    # Flatten to a lane-dense 2D slab. Keep D on the lane axis if it is already a
    # multiple of 128; otherwise fold the sequence axis into the lane axis (S*D).
    if D % 128 == 0:
        rows, cols = B * S, D
        pe_flat = pe_row[None, :]                          # (1, D)
    else:
        rows, cols = B, S * D
        pe_flat = jnp.tile(pe_row, S)[None, :]             # (1, S*D) -- pe repeated per position
    x2 = xc.reshape(rows, cols)

    target_bytes, vmem_limit, is_v7 = _block_config()
    row_block, col_block = _choose_blocks(rows, cols, itemsize, target_bytes,
                                          want_two_steps=is_v7)
    grid = (pl.cdiv(rows, row_block), pl.cdiv(cols, col_block))

    compiler_kwargs = dict(dimension_semantics=("parallel", "parallel"))
    if vmem_limit is not None:
        compiler_kwargs["vmem_limit_bytes"] = vmem_limit

    out2 = pl.pallas_call(
        _pe_add_kernel,
        out_shape=jax.ShapeDtypeStruct((rows, cols), out_dtype),
        grid=grid,
        in_specs=[
            pl.BlockSpec((row_block, col_block), lambda i, j: (i, j)),   # x tile
            pl.BlockSpec((1, col_block), lambda i, j: (0, j)),           # PE follows col index
        ],
        out_specs=pl.BlockSpec((row_block, col_block), lambda i, j: (i, j)),
        # Pure in-place add; Pallas reads block (i, j) before writing it, so aliasing is
        # safe even with partial edge blocks. Halves HBM footprint.
        input_output_aliases={0: 0},
        cost_estimate=pl.CostEstimate(
            flops=rows * cols,
            transcendentals=0,
            bytes_accessed=2 * rows * cols * itemsize + cols * itemsize,
        ),
        compiler_params=pltpu.CompilerParams(**compiler_kwargs),
    )(x2, pe_flat)
    return out2.reshape(B, S, D)


if __name__ == "__main__":
    max_len = 600
    key = jax.random.PRNGKey(0)

    # 1) Module's shipped small shape: batch=2, seq=8, d_model=32. Force the kernel path so
    #    the Pallas kernel itself is exercised (the wrapper would otherwise take the fused
    #    plain-JAX fast path at this tiny size).
    B, S, D = 2, 8, 32
    k0, k1 = jax.random.split(key)
    x = jax.random.normal(k0, (B, S, D), dtype=jnp.float32)
    pe_table = _build_pe_table(D, max_len)
    # Reference computed before the kernel call since the kernel aliases (donates) x.
    ref = x + pe_table[S][None, None, :]

    out = positional_encoding_forward(x, pe_table, force_kernel=True)
    out = jax.block_until_ready(out)
    assert out.shape == (B, S, D)
    assert jnp.allclose(out, ref, atol=1e-6), "kernel path mismatch vs reference"

    # Fast path (tiny slab, no forced kernel) must give the same answer.
    x_fast = jax.random.normal(k1, (B, S, D), dtype=jnp.float32)
    ref_fast = x_fast + pe_table[S][None, None, :]
    out_fast = jax.block_until_ready(positional_encoding_forward(x_fast, pe_table))
    assert jnp.allclose(out_fast, ref_fast, atol=1e-6), "fast path mismatch vs reference"

    # 2) A modest larger shape with D a multiple of 128 that naturally takes the kernel path.
    B2, S2, D2 = 2, 300, 128
    x2 = jax.random.normal(jax.random.PRNGKey(1), (B2, S2, D2), dtype=jnp.float32)
    pe_table2 = _build_pe_table(D2, max_len)
    ref2 = x2 + pe_table2[S2][None, None, :]
    out2 = jax.block_until_ready(positional_encoding_forward(x2, pe_table2))
    assert out2.shape == (B2, S2, D2)
    assert jnp.allclose(out2, ref2, atol=1e-6), "D%128==0 path mismatch vs reference"

    print("KERNEL_OK")
</pallas_src>

<mosaic_0001>
module attributes {stable_mosaic.version = 11 : i64} {
  func.func @_pe_add_kernel(%arg0: i32, %arg1: i32, %arg2: memref<2x256xf32, #tpu.memory_space<vmem>>, %arg3: memref<1x256xf32, #tpu.memory_space<vmem>>, %arg4: memref<2x256xf32, #tpu.memory_space<vmem>>) attributes {dimension_semantics = [#tpu.dimension_semantics<parallel>, #tpu.dimension_semantics<parallel>], iteration_bounds = array<i64: 1, 1>, scalar_prefetch = 0 : i64, scratch_operands = 0 : i64, tpu.core_type = #tpu.core_type<tc>, window_params = [{transform_indices = @transform_0, window_bounds = array<i64: 2, 256>}, {transform_indices = @transform_1, window_bounds = array<i64: 1, 256>}, {transform_indices = @transform_2, window_bounds = array<i64: 2, 256>}]} {
    %c0 = arith.constant 0 : index
    %c0_0 = arith.constant 0 : index
    %0 = vector.load %arg2[%c0, %c0_0] : memref<2x256xf32, #tpu.memory_space<vmem>>, vector<2x256xf32>
    %c0_1 = arith.constant 0 : index
    %c0_2 = arith.constant 0 : index
    %1 = vector.load %arg3[%c0_1, %c0_2] : memref<1x256xf32, #tpu.memory_space<vmem>>, vector<1x256xf32>
    %2 = vector.broadcast %1 : vector<1x256xf32> to vector<2x256xf32>
    %3 = arith.addf %0, %2 : vector<2x256xf32>
    %c0_3 = arith.constant 0 : index
    %c0_4 = arith.constant 0 : index
    %4 = vector.load %arg4[%c0_3, %c0_4] : memref<2x256xf32, #tpu.memory_space<vmem>>, vector<2x256xf32>
    tpu.vector_store %arg4[%c0_3, %c0_4], %3 {strides = array<i32>} : memref<2x256xf32, #tpu.memory_space<vmem>>, vector<2x256xf32>,
    return
  }
  func.func @transform_0(%arg0: i32, %arg1: i32) -> (i32, i32) {
    %c0_i32 = arith.constant 0 : i32
    return %arg0, %arg1 : i32, i32
  }
  func.func @transform_1(%arg0: i32, %arg1: i32) -> (i32, i32) {
    %c0_i32 = arith.constant 0 : i32
    %c0_i32_0 = arith.constant 0 : i32
    return %c0_i32, %arg1 : i32, i32
  }
  func.func @transform_2(%arg0: i32, %arg1: i32) -> (i32, i32) {
    %c0_i32 = arith.constant 0 : i32
    return %arg0, %arg1 : i32, i32
  }
}

</mosaic_0001>

<llo_original>
// kernel: tpu_custom_call.1
$region0: #{tpu_custom_call.1}
  #allocation0 [shape = 'u32[]', space=smem, size = 0x4, offset = 0x4, fixed_abs, tag = 'smem constant byte address 0x4 - core index']
  #allocation1 [shape = 'u32[144,128]{1,0:T(1,128)}', space=vmem, size = 0x12000, scoped, tag = 'internal scratch']
  %s0 = inlined_call_operand.hbm [shape: f32[2,256], index: 0, kind: input, shape index: {}, may-alias: {0,2}]
  %s1 = inlined_call_operand.vmem [shape: f32[1,256], index: 1, kind: input, shape index: {}]
  %s2 = inlined_call_operand.hbm [shape: f32[2,256], index: 2, kind: output, shape index: {}, may-alias: {0,2}]
  %s3 = sld [smem:[#allocation0]]
  $region22: #{tpu_custom_call.1} parent=0
    _
  %s5 = ssub.s32 1, %s3
  %s6 = scalar_select 0, %s5, %s3
  $region1: #{tpu_custom_call.1} parent=0
    #allocation2 [shape = 'u8[2048]{0}', space=vmem, size = 0x800, scoped, tag = 'input window, operand 0, single buffered']
    #allocation3 [shape = 's32[1]{0}', space=sflag, size = 0x4, scoped, tag = 'scoped memory for tpu_custom_call.1']
    #allocation4 [shape = 's32[1]{0}', space=sflag, size = 0x4, scoped, tag = 'scoped memory for tpu_custom_call.1']
    #allocation5 [shape = 'u8[2048]{0}', space=vmem, size = 0x800, scoped, tag = 'output window, operand 0, single buffered']
    %7 = vsyncpa [#allocation3], 0
    %8 = vsyncpa [#allocation4], 0
    // Predicated region
    $region2: #{tpu_custom_call.1} parent=1 // pred_check
      _
    $region3: #{tpu_custom_call.1} parent=1 // pred_check_branch
      %10 = sbr.rel (0) target = $region5
    $region4: #{tpu_custom_call.1} parent=1 // pred_region
      %s12 = ssub.s32 64, 64
      %13 = vsyncadd [#allocation3], %s12
      %s15 = sshll.u32 [#allocation2], 4
      %s16 = int_to_ptr.vmem [resolvable:$true] %s15
      %18 = dma.hbm_to_vmem [thread:$0]  %s0, 64, %s16, [#allocation3]
    $region5: #{tpu_custom_call.1} parent=1 // pred_fallthru
      _
    // Predicated region
    $region6: #{tpu_custom_call.1} parent=1 // pred_check
      _
    $region7: #{tpu_custom_call.1} parent=1 // pred_check_branch
      %20 = sbr.rel (0) target = $region9
    $region8: #{tpu_custom_call.1} parent=1 // pred_region
      _
    $region9: #{tpu_custom_call.1} parent=1 // pred_fallthru
      _
    // Predicated region
    $region10: #{tpu_custom_call.1} parent=1 // pred_check
      _
    $region11: #{tpu_custom_call.1} parent=1 // pred_check_branch
      %22 = sbr.rel (0) target = $region13
    $region12: #{tpu_custom_call.1} parent=1 // pred_region
      %23 = dma.done [#allocation3], 64
    $region13: #{tpu_custom_call.1} parent=1 // pred_fallthru
      _
    %v24 = vld [vmem:[#allocation2] sm:$0xf]
    %v25 = vld [vmem:[%s1] sm:$0x3]
    %v27 = vlaneseq
    %v28 = vshrl.u32 %v27, 7
    %v29 = vsub.s32 0, %v28
    %v30 = vrot.slane %v25, %v29
    %v31 = vlaneseq
    %v32 = vshrl.u32 %v31, 7
    %v33 = vsub.s32 1, %v32
    %v34 = vrot.slane %v25, %v33
    %v35 = vcombine.low %v30, %v34
    %v37 = vunpack.c.l.s4 1983009808
    %v38 = vunpack.c.0.s8 %v37
    %v39 = vlaneseq
    %v40 = vshrl.u32 %v39, 7
    %v41 = vsub.s32 %v38, %v40
    %v42 = vrot.slane %v35, %v41
    %v44 = vadd.f32 %v24, %v42
    %45 = vst [vmem:[#allocation5] sm:$0xf] %v44
    // Predicated region
    $region14: #{tpu_custom_call.1} parent=1 // pred_check
      _
    $region15: #{tpu_custom_call.1} parent=1 // pred_check_branch
      %47 = sbr.rel (0) target = $region17
    $region16: #{tpu_custom_call.1} parent=1 // pred_region
      %s49 = ssub.s32 64, 64
      %50 = vsyncadd [#allocation4], %s49
      %s52 = sshll.u32 [#allocation5], 4
      %s53 = int_to_ptr.vmem [resolvable:$true] %s52
      %55 = dma.vmem_to_hbm [thread:$0]  %s53, 64, %s2, [#allocation4]
    $region17: #{tpu_custom_call.1} parent=1 // pred_fallthru
      _
    // Predicated region
    $region18: #{tpu_custom_call.1} parent=1 // pred_check
      _
    $region19: #{tpu_custom_call.1} parent=1 // pred_check_branch
      %57 = sbr.rel (0) target = $region21
    $region20: #{tpu_custom_call.1} parent=1 // pred_region
      %58 = dma.done [#allocation4], 64
    $region21: #{tpu_custom_call.1} parent=1 // pred_fallthru
      _
    %59 = vsyncpa [#allocation3], 1
    %60 = vsyncpa [#allocation4], 1

</llo_original>
